<compile_context>
chip_gen: v7x
topology: tpu7x:2x2x1
jax: 0.10.0
libtpu: 0.0.40
codegen_flags: <defaults>
</compile_context>

<pallas_src>
import functools

import jax
import jax.numpy as jnp
from jax import lax
from jax.experimental import pallas as pl
from jax.experimental.pallas import tpu as pltpu

BN_EPS = 1e-5


def _round_up(x, m):
    return (x + m - 1) // m * m


# -----------------------------------------------------------------------------
# Kernels
# -----------------------------------------------------------------------------
def _dense_kernel_vec_out(x_ref, w1t_ref, b1_ref, w2_ref, b2_ref, o_ref):
    """output_size == 1: fully lane-dense path (batch lives on lanes).

    x_ref  : (tile_n, in)   streamed rows           (MXU dtype)
    w1t_ref: (H, in)        resident, BN folded     (MXU dtype)
    b1_ref : (H, 1)  f32    resident
    w2_ref : (H, 1)  f32    resident
    b2_ref : (1, 1)  f32    resident
    o_ref  : (1, tile_n) f32 lane-dense output slab
    """
    # Linear 1 (+BN fold):  (H,in) . (tile_n,in)^T -> (H, tile_n)      (MXU)
    ht = lax.dot_general(
        w1t_ref[...], x_ref[...],
        dimension_numbers=(((1,), (1,)), ((), ())),
        preferred_element_type=jnp.float32)
    # bias + Dropout(eval)=identity + ReLU                              (VPU, f32)
    ht = jnp.maximum(ht + b1_ref[...], 0.0)
    # Linear 2 (H -> 1): weighted sublane reduce -> (1, tile_n)         (VPU + XLU)
    o_ref[...] = jnp.sum(ht * w2_ref[...], axis=0, keepdims=True) + b2_ref[...]


def _dense_kernel_mat_out(x_ref, w1_ref, b1_ref, w2_ref, b2_ref, o_ref):
    """General output_size path: second Linear on the MXU.

    w2/b2 are lane-padded to a multiple of 128 columns by fold_dense_params so
    the output store is a full 128-lane block (no masked partial stores).
    """
    h = jnp.dot(x_ref[...], w1_ref[...],
                preferred_element_type=jnp.float32) + b1_ref[...]
    h = jnp.maximum(h, 0.0)
    o_ref[...] = jnp.dot(h.astype(w2_ref.dtype), w2_ref[...],
                         preferred_element_type=jnp.float32) + b2_ref[...]


# -----------------------------------------------------------------------------
# One-time parameter folding / layout (call ONCE, outside the jitted forward)
# -----------------------------------------------------------------------------
def fold_dense_params(params, *, mxu_dtype=jnp.bfloat16):
    """Fold eval-mode BatchNorm1d (+ Linear-1 bias) into w1/b1 and lay the
    operands out for the kernel.  MXU operands are cast to `mxu_dtype`; all
    VPU-side operands (biases, w2 in the 1-column path) stay f32."""
    hidden = params["w1"].shape[1]
    out_size = params["w2"].shape[1]

    scale = params["gamma"] * lax.rsqrt(params["running_var"] + BN_EPS)      # (1,H)
    w1_f = params["w1"] * scale                                              # (in,H)
    b1_f = (params["b1"] - params["running_mean"]) * scale + params["beta"]  # (1,H)

    if out_size == 1:
        return {
            "w1": w1_f.T.astype(mxu_dtype),                       # (H, in)
            "b1": b1_f.reshape(hidden, 1).astype(jnp.float32),    # (H, 1)
            "w2": params["w2"].reshape(hidden, 1).astype(jnp.float32),
            "b2": params["b2"].reshape(1, 1).astype(jnp.float32),
        }

    out_pad = _round_up(out_size, 128)        # lane-dense output store
    return {
        "w1": w1_f.astype(mxu_dtype),                                         # (in, H)
        "b1": b1_f.astype(jnp.float32),                                       # (1, H)
        "w2": jnp.pad(params["w2"], ((0, 0), (0, out_pad - out_size))).astype(mxu_dtype),
        "b2": jnp.pad(params["b2"], ((0, 0), (0, out_pad - out_size))).astype(jnp.float32),
    }


# -----------------------------------------------------------------------------
# Forward wrapper
# -----------------------------------------------------------------------------
def _pick_tile_n(n, tile_n):
    """>= 2 grid steps when possible (keeps both v7x TensorCores busy),
    128-aligned when large (unmasked lane-dense stores), always 8-aligned."""
    half = pl.cdiv(n, 2)
    if half >= 128:
        cap = (half // 128) * 128
    else:
        cap = _round_up(half, 8)
    t = min(_round_up(tile_n, 8), cap)
    if t >= 128:
        t = (t // 128) * 128
    return max(8, t)


@functools.partial(jax.jit, static_argnames=("out_size", "tile_n"))
def dense_forward(x, folded, *, out_size=1, tile_n=1024):
    """x: (N, input_size).  folded: output of fold_dense_params."""
    n, in_size = x.shape
    w1, b1, w2, b2 = folded["w1"], folded["b1"], folded["w2"], folded["b2"]

    # Stream X in the MXU dtype (ideally the caller already supplies this
    # dtype so the cast fuses upstream / is a no-op; it halves the only
    # streamed operand's DMA bytes when bf16).
    x = x.astype(w1.dtype)

    # ---- Row tiling + VMEM budget (v7x has 64 MiB physical VMEM).
    tile = _pick_tile_n(n, tile_n)
    lane = lambda d: _round_up(max(d, 1), 128)
    sub = lambda d: _round_up(max(d, 1), 8)

    def vmem_need(t):
        resident = sum(2 * sub(a.shape[0]) * lane(a.shape[1]) * 4
                       for a in (w1, b1, w2, b2))
        x_buf = 2 * sub(t) * lane(in_size) * jnp.dtype(w1.dtype).itemsize
        o_lanes = t if out_size == 1 else w2.shape[1]
        o_buf = 2 * 8 * lane(o_lanes) * 4
        return resident + x_buf + o_buf

    while tile > 128 and vmem_need(tile) > 40 * 1024 * 1024:
        tile = max(128, tile // 2)

    num_tiles = pl.cdiv(n, tile)     # no wrapper-side padding of X: Pallas
                                     # masks the ragged boundary block itself.
    vmem_limit = int(min(64 * 1024 * 1024, max(16 * 1024 * 1024, 2 * vmem_need(tile))))

    resident = lambda a: pl.BlockSpec(a.shape, lambda i: (0,) * a.ndim)
    cparams = pltpu.CompilerParams(
        dimension_semantics=("parallel",),    # shards row tiles across v7x TCs
        vmem_limit_bytes=vmem_limit,
    )

    if out_size == 1:
        out = pl.pallas_call(
            _dense_kernel_vec_out,
            out_shape=jax.ShapeDtypeStruct((num_tiles, 1, tile), jnp.float32),
            grid=(num_tiles,),
            in_specs=[
                pl.BlockSpec((tile, in_size), lambda i: (i, 0)),  # X streams
                resident(w1), resident(b1), resident(w2), resident(b2),
            ],
            # Lane-dense (1, tile) slab per grid step; batch on lanes.
            out_specs=pl.BlockSpec((None, 1, tile), lambda i: (i, 0, 0)),
            compiler_params=cparams,
        )(x, w1, b1, w2, b2)
        # Only the tiny output (n floats) is reshaped/sliced wrapper-side.
        return out.reshape(-1)[:n].reshape(n, 1)

    out_pad = w2.shape[1]
    out = pl.pallas_call(
        _dense_kernel_mat_out,
        out_shape=jax.ShapeDtypeStruct((n, out_pad), jnp.float32),
        grid=(num_tiles,),
        in_specs=[
            pl.BlockSpec((tile, in_size), lambda i: (i, 0)),
            resident(w1), resident(b1), resident(w2), resident(b2),
        ],
        out_specs=pl.BlockSpec((tile, out_pad), lambda i: (i, 0)),
        compiler_params=cparams,
    )(x, w1, b1, w2, b2)
    return out[:, :out_size]


# -----------------------------------------------------------------------------
# Params / reference
# -----------------------------------------------------------------------------
def _xavier_uniform(key, fan_in, fan_out):
    bound = jnp.sqrt(6.0 / (fan_in + fan_out))
    # stored as (in, out): transpose of PyTorch's (out, in) weight
    return jax.random.uniform(key, (fan_in, fan_out), jnp.float32,
                              minval=-bound, maxval=bound)


def init_params(key, input_size=10, layer_size=16, output_size=1):
    k1, k2 = jax.random.split(key, 2)
    return {
        "w1": _xavier_uniform(k1, input_size, layer_size),
        "b1": jnp.zeros((1, layer_size), jnp.float32),
        "gamma": jnp.ones((1, layer_size), jnp.float32),
        "beta": jnp.zeros((1, layer_size), jnp.float32),
        "running_mean": jnp.zeros((1, layer_size), jnp.float32),
        "running_var": jnp.ones((1, layer_size), jnp.float32),
        "w2": _xavier_uniform(k2, layer_size, output_size),
        "b2": jnp.zeros((1, output_size), jnp.float32),
    }


def dense_reference(x, p):
    """Pure-JAX eval-mode reference (explicit, unfused BN path, f32)."""
    h = x @ p["w1"] + p["b1"]
    h = (h - p["running_mean"]) / jnp.sqrt(p["running_var"] + BN_EPS)
    h = h * p["gamma"] + p["beta"]
    h = jnp.maximum(h, 0.0)
    return h @ p["w2"] + p["b2"]


if __name__ == "__main__":
    key = jax.random.PRNGKey(0)
    k_x, k_p = jax.random.split(key)

    batch, input_size, layer_size, output_size = 256, 10, 16, 1
    x = jax.random.normal(k_x, (batch, input_size), jnp.float32)
    params = init_params(k_p, input_size, layer_size, output_size)
    ref = dense_reference(x, params)

    # f32 MXU operands: strict correctness check (tile_n=128 -> grid=(2,)).
    folded_f32 = fold_dense_params(params, mxu_dtype=jnp.float32)
    out_f32 = jax.block_until_ready(dense_forward(x, folded_f32, out_size=output_size))
    assert out_f32.shape == (batch, output_size)
    assert jnp.allclose(out_f32, ref, atol=1e-5, rtol=1e-5)

    # bf16 MXU operands (default fast path): looser tolerance vs f32 reference.
    folded_bf16 = fold_dense_params(params)   # mxu_dtype=bfloat16
    out_bf16 = jax.block_until_ready(dense_forward(x, folded_bf16, out_size=output_size))
    assert out_bf16.shape == (batch, output_size)
    assert jnp.allclose(out_bf16, ref, atol=5e-2, rtol=5e-2)

    print("KERNEL_OK")
</pallas_src>

<mosaic_0001>
module attributes {stable_mosaic.version = 11 : i64} {
  func.func @_dense_kernel_vec_out(%arg0: i32, %arg1: memref<128x10xf32, #tpu.memory_space<vmem>>, %arg2: memref<16x10xf32, #tpu.memory_space<vmem>>, %arg3: memref<16x1xf32, #tpu.memory_space<vmem>>, %arg4: memref<16x1xf32, #tpu.memory_space<vmem>>, %arg5: memref<1x1xf32, #tpu.memory_space<vmem>>, %arg6: memref<1x1x128xf32, #tpu.memory_space<vmem>>) attributes {dimension_semantics = [#tpu.dimension_semantics<parallel>], iteration_bounds = array<i64: 2>, scalar_prefetch = 0 : i64, scratch_operands = 0 : i64, tpu.core_type = #tpu.core_type<tc>, window_params = [{transform_indices = @transform_0, window_bounds = array<i64: 128, 10>}, {pipeline_mode = #tpu.pipeline_mode<synchronous>, transform_indices = @transform_1, window_bounds = array<i64: 16, 10>}, {pipeline_mode = #tpu.pipeline_mode<synchronous>, transform_indices = @transform_2, window_bounds = array<i64: 16, 1>}, {pipeline_mode = #tpu.pipeline_mode<synchronous>, transform_indices = @transform_3, window_bounds = array<i64: 16, 1>}, {pipeline_mode = #tpu.pipeline_mode<synchronous>, transform_indices = @transform_4, window_bounds = array<i64: 1, 1>}, {transform_indices = @transform_5, window_bounds = array<i64: 1, 1, 128>}]} {
    %c0 = arith.constant 0 : index
    %c0_0 = arith.constant 0 : index
    %0 = vector.load %arg2[%c0, %c0_0] : memref<16x10xf32, #tpu.memory_space<vmem>>, vector<16x10xf32>
    %c0_1 = arith.constant 0 : index
    %c0_2 = arith.constant 0 : index
    %1 = vector.load %arg1[%c0_1, %c0_2] : memref<128x10xf32, #tpu.memory_space<vmem>>, vector<128x10xf32>
    %cst = arith.constant dense<0.000000e+00> : vector<16x128xf32>
    %2 = tpu.matmul %0, %1, %cst {dimension_numbers = #tpu.dot_dimension_numbers<[1], [1], [0], [0], [0, 0, 1, 0], [], []>} : vector<16x10xf32>, vector<128x10xf32>, vector<16x128xf32> -> vector<16x128xf32>
    %c0_3 = arith.constant 0 : index
    %c0_4 = arith.constant 0 : index
    %3 = vector.load %arg3[%c0_3, %c0_4] : memref<16x1xf32, #tpu.memory_space<vmem>>, vector<16x1xf32>
    %4 = vector.broadcast %3 : vector<16x1xf32> to vector<16x128xf32>
    %5 = arith.addf %2, %4 : vector<16x128xf32>
    %cst_5 = arith.constant 0.000000e+00 : f32
    %6 = vector.broadcast %cst_5 : f32 to vector<16x128xf32>
    %7 = arith.maximumf %5, %6 : vector<16x128xf32>
    %c0_6 = arith.constant 0 : index
    %c0_7 = arith.constant 0 : index
    %8 = vector.load %arg4[%c0_6, %c0_7] : memref<16x1xf32, #tpu.memory_space<vmem>>, vector<16x1xf32>
    %9 = vector.broadcast %8 : vector<16x1xf32> to vector<16x128xf32>
    %10 = arith.mulf %7, %9 : vector<16x128xf32>
    %cst_8 = arith.constant dense<0.000000e+00> : vector<128xf32>
    %11 = vector.multi_reduction <add>, %10, %cst_8 [0] : vector<16x128xf32> to vector<128xf32>
    %12 = vector.shape_cast %11 : vector<128xf32> to vector<1x128xf32>
    %c0_9 = arith.constant 0 : index
    %c0_10 = arith.constant 0 : index
    %13 = vector.load %arg5[%c0_9, %c0_10] : memref<1x1xf32, #tpu.memory_space<vmem>>, vector<1x1xf32>
    %14 = vector.broadcast %13 : vector<1x1xf32> to vector<1x128xf32>
    %15 = arith.addf %12, %14 : vector<1x128xf32>
    %c0_11 = arith.constant 0 : index
    %c0_12 = arith.constant 0 : index
    %c0_13 = arith.constant 0 : index
    %16 = vector.load %arg6[%c0_11, %c0_12, %c0_13] : memref<1x1x128xf32, #tpu.memory_space<vmem>>, vector<1x1x128xf32>
    %17 = vector.shape_cast %16 : vector<1x1x128xf32> to vector<1x128xf32>
    %18 = vector.shape_cast %15 : vector<1x128xf32> to vector<1x1x128xf32>
    tpu.vector_store %arg6[%c0_11, %c0_12, %c0_13], %18 {strides = array<i32>} : memref<1x1x128xf32, #tpu.memory_space<vmem>>, vector<1x1x128xf32>,
    return
  }
  func.func @transform_0(%arg0: i32) -> (i32, i32) {
    %c0_i32 = arith.constant 0 : i32
    %c0_i32_0 = arith.constant 0 : i32
    return %arg0, %c0_i32 : i32, i32
  }
  func.func @transform_1(%arg0: i32) -> (i32, i32) {
    %c0_i32 = arith.constant 0 : i32
    %c0_i32_0 = arith.constant 0 : i32
    %c0_i32_1 = arith.constant 0 : i32
    return %c0_i32, %c0_i32_0 : i32, i32
  }
  func.func @transform_2(%arg0: i32) -> (i32, i32) {
    %c0_i32 = arith.constant 0 : i32
    %c0_i32_0 = arith.constant 0 : i32
    %c0_i32_1 = arith.constant 0 : i32
    return %c0_i32, %c0_i32_0 : i32, i32
  }
  func.func @transform_3(%arg0: i32) -> (i32, i32) {
    %c0_i32 = arith.constant 0 : i32
    %c0_i32_0 = arith.constant 0 : i32
    %c0_i32_1 = arith.constant 0 : i32
    return %c0_i32, %c0_i32_0 : i32, i32
  }
  func.func @transform_4(%arg0: i32) -> (i32, i32) {
    %c0_i32 = arith.constant 0 : i32
    %c0_i32_0 = arith.constant 0 : i32
    %c0_i32_1 = arith.constant 0 : i32
    return %c0_i32, %c0_i32_0 : i32, i32
  }
  func.func @transform_5(%arg0: i32) -> (i32, i32, i32) {
    %c0_i32 = arith.constant 0 : i32
    %c0_i32_0 = arith.constant 0 : i32
    %c0_i32_1 = arith.constant 0 : i32
    return %arg0, %c0_i32, %c0_i32_0 : i32, i32, i32
  }
}

</mosaic_0001>

<llo_original>
// kernel: dense_forward.1
$region0: #{dense_forward.1}
  #allocation0 [shape = 'u32[]', space=smem, size = 0x4, offset = 0x4, fixed_abs, tag = 'smem constant byte address 0x4 - core index']
  #allocation1 [shape = 'u32[144,128]{1,0:T(1,128)}', space=vmem, size = 0x12000, scoped, tag = 'internal scratch']
  #allocation2 [shape = 'f32[1,1]{1,0:T(1,128)S(1)}', space=vmem, size = 0x200, scoped, tag = 'scoped memory for dense_forward.1']
  %s0 = inlined_call_operand.vmem [shape: f32[256,10], index: 0, kind: input, shape index: {}]
  %s1 = inlined_call_operand.vmem [shape: f32[16,10], index: 1, kind: input, shape index: {}]
  %s2 = inlined_call_operand.vmem [shape: f32[16,1], index: 2, kind: input, shape index: {}]
  %s3 = inlined_call_operand.vmem [shape: f32[16,1], index: 3, kind: input, shape index: {}]
  %s4 = inlined_call_operand.<no memory space> [shape: f32[1,1], index: 4, kind: input, shape index: {}]
  %s5 = inlined_call_operand.hbm [shape: f32[2,1,128], index: 5, kind: output, shape index: {}]
  %s6 = sld [smem:[#allocation0]]
  $region53: #{dense_forward.1} parent=0
    _
  %s8 = ssub.s32 1, %s6
  %s9 = scalar_select 0, %s8, %s6
  %v10 = vstv %s4
  %11 = vst [vmem:[#allocation2] sm:$0x1] %v10
  $region1: #{dense_forward.1} parent=0
    #allocation3 [shape = 'u8[1024]{0}', space=vmem, size = 0x400, scoped, tag = 'output window, operand 0']
    #allocation4 [shape = 's32[2]{0}', space=sflag, size = 0x8, scoped, tag = 'scoped memory for dense_forward.1']
    %12 = vsyncpa [#allocation4], 0
    %s13 = scalar_lea.sflag [#allocation4], 1
    %14 = vsyncpa %s13, 0
    loop: start=0, step=1, limit=4
    $region2: #{dense_forward.1} parent=1 // loop_pre_header
      _
    $region3: #{dense_forward.1} parent=1 // loop_header
      %s16 = sphi 0, %s20
      %p17 = scmp.ge.s32.totalorder %s16, 4
      %s26 = sphi 0, %s28
      %s29 = sphi 0, %s26
      %s30 = sphi 0, %s29
      %s46 = sphi 0, %s30
      %s50 = sphi 0, %s50
      %s52 = sphi 0, %s50
      %s53 = sphi 0, %s52
      %s67 = sphi 0, %s53
      %s71 = sphi 0, %s71
      %s73 = sphi 0, %s71
      %s74 = sphi 0, %s73
      %s88 = sphi 0, %s74
      %s92 = sphi 0, %s92
      %s94 = sphi 0, %s92
      %s95 = sphi 0, %s94
      %s109 = sphi 0, %s95
      %s113 = sphi 0, %s113
      %s115 = sphi 0, %s113
      %s116 = sphi 0, %s115
      %s130 = sphi 0, %s116
      %s136 = sphi 0, %s138
      %s139 = sphi 0, %s136
      %s140 = sphi 0, %s139
      %s156 = sphi 0, %s140
    $region4: #{dense_forward.1} parent=1 // loop_header_branch
      %19 = sbr.rel (%p17) target = $region8
    $region5: #{dense_forward.1} parent=1 // loop_body
      %s21 = ssub.s32 %s16, 1
      %s22 = ssub.s32 %s16, 2
      %s23 = sadd.s32 %s16, 1
      %s24 = ssub.s32 %s16, %s23
      %p25 = scmp.eq.s32.totalorder %s24, 0
      %s27 = sadd.s32 %s26, 1
      %s28 = scalar_select %p25, %s26, %s27
      %p31 = pneg %p25
      %p32 = scmp.eq.s32.totalorder %s16, 1
      %p33 = por %p31, %p32
      %p34 = scmp.ne.s32.totalorder %s26, %s29
      %p35 = scmp.eq.s32.totalorder %s16, 0
      %p36 = por %p34, %p35
      %p37 = scmp.ne.s32.totalorder %s26, %s29
      %p38 = scmp.eq.s32.totalorder %s21, 1
      %p39 = por %p37, %p38
      %p40 = scmp.ne.s32.totalorder %s29, %s30
      %p41 = scmp.eq.s32.totalorder %s21, 0
      %p42 = por %p40, %p41
      %p43 = scmp.ne.s32.totalorder %s29, %s30
      %p44 = scmp.eq.s32.totalorder %s22, 1
      %p45 = por %p43, %p44
      %p47 = scmp.ne.s32.totalorder %s30, %s46
      %p48 = scmp.eq.s32.totalorder %s22, 0
      %p49 = por %p47, %p48
      %s51 = sadd.s32 %s50, 1
      %p54 = scmp.eq.s32.totalorder %s16, 1
      %p55 = scmp.ne.s32.totalorder %s50, %s52
      %p56 = scmp.eq.s32.totalorder %s16, 0
      %p57 = por %p55, %p56
      %p58 = scmp.ne.s32.totalorder %s50, %s52
      %p59 = scmp.eq.s32.totalorder %s21, 1
      %p60 = por %p58, %p59
      %p61 = scmp.ne.s32.totalorder %s52, %s53
      %p62 = scmp.eq.s32.totalorder %s21, 0
      %p63 = por %p61, %p62
      %p64 = scmp.ne.s32.totalorder %s52, %s53
      %p65 = scmp.eq.s32.totalorder %s22, 1
      %p66 = por %p64, %p65
      %p68 = scmp.ne.s32.totalorder %s53, %s67
      %p69 = scmp.eq.s32.totalorder %s22, 0
      %p70 = por %p68, %p69
      %s72 = sadd.s32 %s71, 1
      %p75 = scmp.eq.s32.totalorder %s16, 1
      %p76 = scmp.ne.s32.totalorder %s71, %s73
      %p77 = scmp.eq.s32.totalorder %s16, 0
      %p78 = por %p76, %p77
      %p79 = scmp.ne.s32.totalorder %s71, %s73
      %p80 = scmp.eq.s32.totalorder %s21, 1
      %p81 = por %p79, %p80
      %p82 = scmp.ne.s32.totalorder %s73, %s74
      %p83 = scmp.eq.s32.totalorder %s21, 0
      %p84 = por %p82, %p83
      %p85 = scmp.ne.s32.totalorder %s73, %s74
      %p86 = scmp.eq.s32.totalorder %s22, 1
      %p87 = por %p85, %p86
      %p89 = scmp.ne.s32.totalorder %s74, %s88
      %p90 = scmp.eq.s32.totalorder %s22, 0
      %p91 = por %p89, %p90
      %s93 = sadd.s32 %s92, 1
      %p96 = scmp.eq.s32.totalorder %s16, 1
      %p97 = scmp.ne.s32.totalorder %s92, %s94
      %p98 = scmp.eq.s32.totalorder %s16, 0
      %p99 = por %p97, %p98
      %p100 = scmp.ne.s32.totalorder %s92, %s94
      %p101 = scmp.eq.s32.totalorder %s21, 1
      %p102 = por %p100, %p101
      %p103 = scmp.ne.s32.totalorder %s94, %s95
      %p104 = scmp.eq.s32.totalorder %s21, 0
      %p105 = por %p103, %p104
      %p106 = scmp.ne.s32.totalorder %s94, %s95
      %p107 = scmp.eq.s32.totalorder %s22, 1
      %p108 = por %p106, %p107
      %p110 = scmp.ne.s32.totalorder %s95, %s109
      %p111 = scmp.eq.s32.totalorder %s22, 0
      %p112 = por %p110, %p111
      %s114 = sadd.s32 %s113, 1
      %p117 = scmp.eq.s32.totalorder %s16, 1
      %p118 = scmp.ne.s32.totalorder %s113, %s115
      %p119 = scmp.eq.s32.totalorder %s16, 0
      %p120 = por %p118, %p119
      %p121 = scmp.ne.s32.totalorder %s113, %s115
      %p122 = scmp.eq.s32.totalorder %s21, 1
      %p123 = por %p121, %p122
      %p124 = scmp.ne.s32.totalorder %s115, %s116
      %p125 = scmp.eq.s32.totalorder %s21, 0
      %p126 = por %p124, %p125
      %p127 = scmp.ne.s32.totalorder %s115, %s116
      %p128 = scmp.eq.s32.totalorder %s22, 1
      %p129 = por %p127, %p128
      %p131 = scmp.ne.s32.totalorder %s116, %s130
      %p132 = scmp.eq.s32.totalorder %s22, 0
      %p133 = por %p131, %p132
      %s134 = ssub.s32 %s16, %s23
      %p135 = scmp.eq.s32.totalorder %s134, 0
      %s137 = sadd.s32 %s136, 1
      %s138 = scalar_select %p135, %s136, %s137
      %p141 = pneg %p135
      %p142 = scmp.eq.s32.totalorder %s16, 1
      %p143 = por %p141, %p142
      %p144 = scmp.ne.s32.totalorder %s136, %s139
      %p145 = scmp.eq.s32.totalorder %s16, 0
      %p146 = por %p144, %p145
      %p147 = scmp.ne.s32.totalorder %s136, %s139
      %p148 = scmp.eq.s32.totalorder %s21, 1
      %p149 = por %p147, %p148
      %p150 = scmp.ne.s32.totalorder %s139, %s140
      %p151 = scmp.eq.s32.totalorder %s21, 0
      %p152 = por %p150, %p151
      %p153 = scmp.ne.s32.totalorder %s139, %s140
      %p154 = scmp.eq.s32.totalorder %s22, 1
      %p155 = por %p153, %p154
      %p157 = scmp.ne.s32.totalorder %s140, %s156
      %p158 = scmp.eq.s32.totalorder %s22, 0
      %p159 = por %p157, %p158
      %p160 = scmp.le.s32.totalorder 1, %s16
      %p161 = scmp.lt.s32.totalorder %s16, 3
      %p162 = pnand %p160, %p161
      %p163 = pneg %p162
      // Predicated region
      $region9: #{dense_forward.1} parent=5 // pred_check
        _
      $region10: #{dense_forward.1} parent=5 // pred_check_branch
        %165 = sbr.rel (%p162) target = $region12
      $region11: #{dense_forward.1} parent=5 // pred_region
        %s166 = ssub.s32 %s16, 1
        // Predicated region
        $region13: #{dense_forward.1} parent=11 // pred_check
          %p167 = pneg %p63
        $region14: #{dense_forward.1} parent=11 // pred_check_branch
          %169 = sbr.rel (%p167) target = $region16
        $region15: #{dense_forward.1} parent=11 // pred_region
          _
        $region16: #{dense_forward.1} parent=11 // pred_fallthru
          _
        // Predicated region
        $region17: #{dense_forward.1} parent=11 // pred_check
          %p170 = pneg %p84
        $region18: #{dense_forward.1} parent=11 // pred_check_branch
          %172 = sbr.rel (%p170) target = $region20
        $region19: #{dense_forward.1} parent=11 // pred_region
          _
        $region20: #{dense_forward.1} parent=11 // pred_fallthru
          _
        // Predicated region
        $region21: #{dense_forward.1} parent=11 // pred_check
          %p173 = pneg %p105
        $region22: #{dense_forward.1} parent=11 // pred_check_branch
          %175 = sbr.rel (%p173) target = $region24
        $region23: #{dense_forward.1} parent=11 // pred_region
          _
        $region24: #{dense_forward.1} parent=11 // pred_fallthru
          _
        // Predicated region
        $region25: #{dense_forward.1} parent=11 // pred_check
          %p176 = pneg %p126
        $region26: #{dense_forward.1} parent=11 // pred_check_branch
          %178 = sbr.rel (%p176) target = $region28
        $region27: #{dense_forward.1} parent=11 // pred_region
          _
        $region28: #{dense_forward.1} parent=11 // pred_fallthru
          _
      $region12: #{dense_forward.1} parent=5 // pred_fallthru
        _
      %p179 = scmp.lt.s32.totalorder %s16, 2
      // Predicated region
      $region29: #{dense_forward.1} parent=5 // pred_check
        %p180 = pneg %p179
      $region30: #{dense_forward.1} parent=5 // pred_check_branch
        %182 = sbr.rel (%p180) target = $region32
      $region31: #{dense_forward.1} parent=5 // pred_region
        // Predicated region
        $region33: #{dense_forward.1} parent=31 // pred_check
          %p183 = pneg %p36
        $region34: #{dense_forward.1} parent=31 // pred_check_branch
          %185 = sbr.rel (%p183) target = $region36
        $region35: #{dense_forward.1} parent=31 // pred_region
          %s186 = smul.u32 16, %s16
          %p187 = scmp.lt.s32.totalorder %s186, 31
          %s188 = scalar_select %p187, %s186, 31
          %s189 = smul.addr %s188, 8
          %s190 = scalar_lea.vmem %s0, %s189
          %s191 = smul.u32 16, %s16
        $region36: #{dense_forward.1} parent=31 // pred_fallthru
          _
      $region32: #{dense_forward.1} parent=5 // pred_fallthru
        _
      %p192 = scmp.le.s32.totalorder 1, %s16
      %p193 = scmp.lt.s32.totalorder %s16, 3
      %p194 = pnand %p192, %p193
      %p195 = pneg %p194
      // Predicated region
      $region37: #{dense_forward.1} parent=5 // pred_check
        _
      $region38: #{dense_forward.1} parent=5 // pred_check_branch
        %197 = sbr.rel (%p194) target = $region40
      $region39: #{dense_forward.1} parent=5 // pred_region
        %s198 = ssub.s32 %s16, 1
        %s199 = smul.u32 16, %s21
        %p200 = scmp.lt.s32.totalorder %s199, 31
        %s201 = scalar_select %p200, %s199, 31
        %s202 = smul.addr %s201, 8
        %s203 = scalar_lea.vmem %s0, %s202
        %p204 = pneg %p42
        %p205 = pneg %p39
        %p206 = pneg %p63
        %p207 = pneg %p60
        %p208 = pneg %p84
        %p209 = pneg %p81
        %p210 = pneg %p105
        %p211 = pneg %p102
        %p212 = pneg %p126
        %p213 = pneg %p123
        %p214 = pneg %p152
        %p215 = pneg %p149
        %s216 = sand.u32 %s139, 1
        %s217 = scalar_lea.sflag [#allocation4], %s216
        %s218 = sand.u32 %s139, 1
        %s219 = scalar_lea.vmem [#allocation3], %s218
        %s220 = smul.u32 16, %s21
        %p221 = scmp.lt.s32.totalorder %s220, 31
        %s222 = scalar_select %p221, %s220, 31
        %s223 = smul.addr %s222, 8
        %s224 = scalar_lea.vmem %s0, %s223
        %s225 = smul.u32 16, %s21
        %v226 = vld [vmem:[%s1] sm:$0xff]
        %v227 = vld [vmem:[%s1 + $0x8] sm:$0xff]
        %v228 = vld [vmem:[%s224] sm:$0xff]
        %v229 = vld [vmem:[%s224 + $0x8] sm:$0xff]
        %v230 = vld [vmem:[%s224 + $0x10] sm:$0xff]
        %v231 = vld [vmem:[%s224 + $0x18] sm:$0xff]
        %v232 = vld [vmem:[%s224 + $0x20] sm:$0xff]
        %v233 = vld [vmem:[%s224 + $0x28] sm:$0xff]
        %v234 = vld [vmem:[%s224 + $0x30] sm:$0xff]
        %v235 = vld [vmem:[%s224 + $0x38] sm:$0xff]
        %v236 = vld [vmem:[%s224 + $0x40] sm:$0xff]
        %v237 = vld [vmem:[%s224 + $0x48] sm:$0xff]
        %v238 = vld [vmem:[%s224 + $0x50] sm:$0xff]
        %v239 = vld [vmem:[%s224 + $0x58] sm:$0xff]
        %v240 = vld [vmem:[%s224 + $0x60] sm:$0xff]
        %v241 = vld [vmem:[%s224 + $0x68] sm:$0xff]
        %v242 = vld [vmem:[%s224 + $0x70] sm:$0xff]
        %v243 = vld [vmem:[%s224 + $0x78] sm:$0xff]
        %v244 = vld [vmem:[%s2] sm:$0xff]
        %v245 = vld [vmem:[%s2 + $0x8] sm:$0xff]
        %247 = vset.pattern.permute.xlu0 0
        %248 = vperm.xlu0 %247, %v244
        %v249 = vpop.permute.xlu0 %248
        %252 = vset.pattern.permute.xlu0 0
        %253 = vperm.xlu0 %252, %v245
        %v254 = vpop.permute.xlu0 %253
        %vm256 = vcmask 80896
        %v258 = vsel %vm256, %v226, 0
        %v261 = vsel %vm256, %v227, 0
        %v264 = vsel %vm256, %v228, 0
        %v267 = vsel %vm256, %v229, 0
        %v270 = vsel %vm256, %v230, 0
        %v273 = vsel %vm256, %v231, 0
        %v276 = vsel %vm256, %v232, 0
        %v279 = vsel %vm256, %v233, 0
        %v282 = vsel %vm256, %v234, 0
        %v285 = vsel %vm256, %v235, 0
        %v288 = vsel %vm256, %v236, 0
        %v291 = vsel %vm256, %v237, 0
        %v294 = vsel %vm256, %v238, 0
        %v297 = vsel %vm256, %v239, 0
        %v300 = vsel %vm256, %v240, 0
        %v303 = vsel %vm256, %v241, 0
        %v306 = vsel %vm256, %v242, 0
        %v309 = vsel %vm256, %v243, 0
        %311 = vmatprep.subr.mxu0 0.0
        %312 = vmatpush1.xpose.msra.mxu0 %v264
        %313 = vmatprep.subr.mxu0 0.0
        %314 = vmatpush1.xpose.msra.mxu0 %v267
        %315 = vmatprep.subr.mxu0 0.0
        %316 = vmatpush1.xpose.msra.mxu0 %v270
        %317 = vmatprep.subr.mxu0 0.0
        %318 = vmatpush1.xpose.msra.mxu0 %v273
        %319 = vmatprep.subr.mxu0 0.0
        %320 = vmatpush1.xpose.msra.mxu0 %v276
        %321 = vmatprep.subr.mxu0 0.0
        %322 = vmatpush1.xpose.msra.mxu0 %v279
        %323 = vmatprep.subr.mxu0 0.0
        %324 = vmatpush1.xpose.msra.mxu0 %v282
        %325 = vmatprep.subr.mxu0 0.0
        %326 = vmatpush1.xpose.msra.mxu0 %v285
        %327 = vmatprep.subr.mxu0 0.0
        %328 = vmatpush1.xpose.msra.mxu0 %v288
        %329 = vmatprep.subr.mxu0 0.0
        %330 = vmatpush1.xpose.msra.mxu0 %v291
        %331 = vmatprep.subr.mxu0 0.0
        %332 = vmatpush1.xpose.msra.mxu0 %v294
        %333 = vmatprep.subr.mxu0 0.0
        %334 = vmatpush1.xpose.msra.mxu0 %v297
        %335 = vmatprep.subr.mxu0 0.0
        %336 = vmatpush1.xpose.msra.mxu0 %v300
        %337 = vmatprep.subr.mxu0 0.0
        %338 = vmatpush1.xpose.msra.mxu0 %v303
        %339 = vmatprep.subr.mxu0 0.0
        %340 = vmatpush1.xpose.msra.mxu0 %v306
        %341 = vmatprep.subr.mxu0 0.0
        %342 = vmatpush1.xpose.msra.mxu0 %v309
        %343 = vmatprep.subr.mxu0 0.0
        %344 = vmatpush1.xpose.msra.mxu0 0.0
        %345 = vmatprep.subr.mxu0 0.0
        %346 = vmatpush1.xpose.msra.mxu0 0.0
        %347 = vmatprep.subr.mxu0 0.0
        %348 = vmatpush1.xpose.msra.mxu0 0.0
        %349 = vmatprep.subr.mxu0 0.0
        %350 = vmatpush1.xpose.msra.mxu0 0.0
        %351 = vmatprep.subr.mxu0 0.0
        %352 = vmatpush1.xpose.msra.mxu0 0.0
        %353 = vmatprep.subr.mxu0 0.0
        %354 = vmatpush1.xpose.msra.mxu0 0.0
        %355 = vmatprep.subr.mxu0 0.0
        %356 = vmatpush1.xpose.msra.mxu0 0.0
        %357 = vmatprep.subr.mxu0 0.0
        %358 = vmatpush1.xpose.msra.mxu0 0.0
        %359 = vmatprep.subr.mxu0 0.0
        %360 = vmatpush1.xpose.msra.mxu0 0.0
        %361 = vmatprep.subr.mxu0 0.0
        %362 = vmatpush1.xpose.msra.mxu0 0.0
        %363 = vmatprep.subr.mxu0 0.0
        %364 = vmatpush1.xpose.msra.mxu0 0.0
        %365 = vmatprep.subr.mxu0 0.0
        %366 = vmatpush1.xpose.msra.mxu0 0.0
        %367 = vmatprep.subr.mxu0 0.0
        %368 = vmatpush1.xpose.msra.mxu0 0.0
        %369 = vmatprep.subr.mxu0 0.0
        %370 = vmatpush1.xpose.msra.mxu0 0.0
        %371 = vmatprep.subr.mxu0 0.0
        %372 = vmatpush1.xpose.msra.mxu0 0.0
        %373 = vmatprep.subr.mxu0 0.0
        %374 = vmatpush1.xpose.msra.mxu0 0.0
        %375 = vmatprep.mubr.f32.mxu0 0.0
        %376 = vmatmul.mubr.f32.gmra.mrb[0].mxu0 %v258
        %v377 = vpop.f32.mrb[0].mxu0
        %v378 = vadd.f32 %v249, %v377
        %v379 = vpop.f32.mrb[0].mxu0
        %380 = vmatprep.mubr.f32.mxu0 0.0
        %381 = vmatmul.mubr.f32.gmra.mrb[0].mxu0 %v261
        %v382 = vpop.f32.mrb[0].mxu0
        %v383 = vadd.f32 %v254, %v382
        %v384 = vpop.f32.mrb[0].mxu0
        %385 = vdwg.mxu0
        %v386 = vmax.f32 %v378, 0.0
        %v387 = vmax.f32 %v383, 0.0
        %v388 = vld [vmem:[%s3] sm:$0xff]
        %v389 = vld [vmem:[%s3 + $0x8] sm:$0xff]
        %391 = vset.pattern.permute.xlu0 0
        %392 = vperm.xlu0 %391, %v388
        %v393 = vpop.permute.xlu0 %392
        %396 = vset.pattern.permute.xlu0 0
        %397 = vperm.xlu0 %396, %v389
        %v398 = vpop.permute.xlu0 %397
        %v400 = vmul.f32 %v386, %v393
        %v401 = vmul.f32 %v387, %v398
        %v402 = vadd.f32 %v400, %v401
        %v403 = vrot.slane %v402, 4
        %v404 = vadd.f32 %v402, %v403
        %v405 = vrot.slane %v404, 2
        %v406 = vadd.f32 %v404, %v405
        %v407 = vrot.slane %v406, 1
        %v408 = vadd.f32 %v406, %v407
        %v409 = vld [vmem:[#allocation2] sm:$0x1]
        %411 = vset.pattern.permute.xlu0 0
        %412 = vperm.xlu0 %411, %v409
        %v413 = vpop.permute.xlu0 %412
        %v415 = vlaneseq
        %v416 = vshrl.u32 %v415, 7
        %v417 = vsub.s32 0, %v416
        %v418 = vrot.slane %v413, %v417
        %v419 = vadd.f32 %v408, %v418
        %420 = vst [vmem:[%s219] sm:$0x1] %v419
        %s421 = sand.u32 %s139, 1
        %s422 = scalar_lea.sflag [#allocation4], %s421
        %s423 = sand.u32 %s139, 1
        %s424 = scalar_lea.vmem [#allocation3], %s423
        // Predicated region
        $region41: #{dense_forward.1} parent=39 // pred_check
          %p425 = pneg %p149
        $region42: #{dense_forward.1} parent=39 // pred_check_branch
          %427 = sbr.rel (%p425) target = $region44
        $region43: #{dense_forward.1} parent=39 // pred_region
          %s429 = ssub.s32 16, 16
          %430 = vsyncadd %s422, %s429
          %s431 = smul.addr %s21, 16
          %s432 = scalar_lea.hbm %s5, %s431
          %s434 = sshll.u32 %s424, 4
          %s435 = int_to_ptr.vmem [resolvable:$true] %s434
          %437 = dma.vmem_to_hbm [thread:$0]  %s435, 16, %s432, %s422
        $region44: #{dense_forward.1} parent=39 // pred_fallthru
          _
      $region40: #{dense_forward.1} parent=5 // pred_fallthru
        _
      %p438 = scmp.le.s32.totalorder 2, %s16
      // Predicated region
      $region45: #{dense_forward.1} parent=5 // pred_check
        %p439 = pneg %p438
      $region46: #{dense_forward.1} parent=5 // pred_check_branch
        %441 = sbr.rel (%p439) target = $region48
      $region47: #{dense_forward.1} parent=5 // pred_region
        %s442 = ssub.s32 %s16, 2
        // Predicated region
        $region49: #{dense_forward.1} parent=47 // pred_check
          %p443 = pneg %p155
        $region50: #{dense_forward.1} parent=47 // pred_check_branch
          %445 = sbr.rel (%p443) target = $region52
        $region51: #{dense_forward.1} parent=47 // pred_region
          %s446 = sand.u32 %s140, 1
          %s447 = scalar_lea.sflag [#allocation4], %s446
          %s448 = sand.u32 %s140, 1
          %s449 = scalar_lea.vmem [#allocation3], %s448
          %450 = dma.done %s447, 16
        $region52: #{dense_forward.1} parent=47 // pred_fallthru
          _
      $region48: #{dense_forward.1} parent=5 // pred_fallthru
        _
    $region6: #{dense_forward.1} parent=1 // loop_footer
      %s20 = sadd.s32 1, %s16
    $region7: #{dense_forward.1} parent=1 // loop_footer_branch
      %15 = sbr.rel target = $region3
    $region8: #{dense_forward.1} parent=1 // loop_exit
      _
    %451 = vsyncpa [#allocation4], 1
    %s452 = scalar_lea.sflag [#allocation4], 1
    %453 = vsyncpa %s452, 1

</llo_original>
